<compile_context>
chip_gen: v7x
topology: tpu7x:2x2x1
jax: 0.10.0
libtpu: 0.0.40
codegen_flags: <defaults>
</compile_context>

<pallas_src>
import functools

import jax
import jax.numpy as jnp
from jax import lax
from jax.experimental import pallas as pl
from jax.experimental.pallas import tpu as pltpu


_LANE = 128                # lane width -> full vreg occupancy
_CHUNK_ROWS = 256          # in-kernel sub-chunk (multiple of 8/16/32 sublane packing)
_NSLOT = 7                 # raw partial-sum slots
_CON, _POS, _NEG, _SQ, _ACC, _MAR, _SUMP = range(_NSLOT)
_ROW_ALIGN = {4: 8, 2: 16, 1: 32}   # sublane packing granularity per itemsize


def _chip_plan():
    """(num_cores_for_parallel_axis, max_rows_per_tile, vmem_limit_bytes)."""
    try:
        kind = jax.devices()[0].device_kind.lower()
    except Exception:
        kind = ""
    if "v7" in kind:
        # 2 TensorCores, 64 MiB VMEM, compute-bound here -> modest tiles.
        return 2, 2048, 48 * 1024 * 1024
    if "v4" in kind or "v5p" in kind:
        # Megacore chips: split the reduction across both cores.
        return 2, 4096, 64 * 1024 * 1024
    if "v5e" in kind or "v5 lite" in kind or "v6" in kind:
        # Single TensorCore, 128 MiB VMEM: big tiles amortize grid-step overhead.
        return 1, 8192, 64 * 1024 * 1024
    return 1, 4096, 64 * 1024 * 1024


def _plan(total, itemsize):
    """Pick (nc, inner_steps, tm, chunk, main_rows, vmem_limit) or None (no kernel part)."""
    rows = total // _LANE
    nc, tm_max, vmem_limit = _chip_plan()
    if rows >= nc * _CHUNK_ROWS:
        # chunked pipeline: work unit = 256 rows (satisfies every dtype's packing)
        units = rows // _CHUNK_ROWS
        units_per_core = units // nc
        max_ups = max(tm_max // _CHUNK_ROWS, 1)
        inner_steps = -(-units_per_core // max_ups)
        ups = units_per_core // inner_steps
        tm, chunk = ups * _CHUNK_ROWS, _CHUNK_ROWS
    else:
        # small input: one grid step on one core, dtype-aware row alignment
        nc = 1
        row_align = _ROW_ALIGN.get(itemsize, 8)
        tm = (rows // row_align) * row_align
        if tm == 0:
            return None
        inner_steps, chunk = 1, tm
    main_rows = nc * inner_steps * tm
    return nc, inner_steps, tm, chunk, main_rows, vmem_limit


def _dph_kernel(pos_ref, neg_ref, out_ref, *, ls, contrastive, centered,
                use_pos_neg, use_sq, tm, chunk, approx_lse):
    i = pl.program_id(1)

    # zero this core's resident accumulator block on its first inner step
    @pl.when(i == 0)
    def _():
        out_ref[...] = jnp.zeros_like(out_ref)

    use_sump = use_pos_neg and (ls != 0.0)
    n_sub = tm // chunk

    def fold(x):
        # (chunk, 128) -> (8, 128): pure VPU vreg adds, no cross-lane reduction
        return x.reshape(chunk // 8, 8, _LANE).sum(axis=0)

    def lse(neg_abs):
        # log(1 + exp(-|x|)); argument is -|x| <= 0, value bounded in (0, ln 2]
        if approx_lse:
            t = jnp.exp(neg_abs.astype(jnp.bfloat16))
            return jnp.log(1.0 + t).astype(jnp.float32)
        return jnp.log(1.0 + jnp.exp(neg_abs))

    def step(p, n, acc):
        acc = list(acc)
        d = p - n
        acc[_MAR] = acc[_MAR] + fold(d)
        acc[_ACC] = acc[_ACC] + fold(jnp.where(d > 0.0, 1.0, 0.0))
        if use_pos_neg:
            # bce(x,t): relu(-x) + log(1+exp(-|x|)); the linear label-smoothing
            # terms (+ls*p / -ls*n) are recovered in the wrapper from SUMP/MARGIN.
            neg_p = -p
            acc[_POS] = acc[_POS] + fold(jnp.maximum(neg_p, 0.0)
                                         + lse(jnp.minimum(p, neg_p)))
            neg_n = -n
            acc[_NEG] = acc[_NEG] + fold(jnp.maximum(n, 0.0)
                                         + lse(jnp.minimum(n, neg_n)))
            if use_sump:
                acc[_SUMP] = acc[_SUMP] + fold(p)
        if contrastive:
            # (1-ls)*sp(-d) + ls*sp(d) = relu(-d) + ls*d + log(1+exp(-|d|));
            # the ls*d term is recovered from the MARGIN sum in the wrapper.
            neg_d = n - p
            acc[_CON] = acc[_CON] + fold(jnp.maximum(neg_d, 0.0)
                                         + lse(jnp.minimum(d, neg_d)))
        if use_sq:
            sq = p * p + n * n if centered else (p + n) * (p + n)
            acc[_SQ] = acc[_SQ] + fold(sq)
        return tuple(acc)

    init = tuple(jnp.zeros((8, _LANE), jnp.float32) for _ in range(_NSLOT))
    if n_sub == 1:
        # .float() semantics: upcast after the (possibly bf16) load
        sums = step(pos_ref[...].astype(jnp.float32),
                    neg_ref[...].astype(jnp.float32), init)
    else:
        def body(j, acc):
            r0 = pl.multiple_of(j * chunk, chunk)
            p = pos_ref[pl.ds(r0, chunk), :].astype(jnp.float32)
            n = neg_ref[pl.ds(r0, chunk), :].astype(jnp.float32)
            return step(p, n, acc)
        sums = lax.fori_loop(0, n_sub, body, init)

    used = (contrastive, use_pos_neg, use_pos_neg, use_sq, True, True, use_sump)
    for k in range(_NSLOT):
        if used[k]:
            out_ref[0, k] += sums[k]


def _raw_sums_jax(p, n, *, contrastive, centered, use_pos_neg, use_sq):
    """Same raw partial sums as the kernel, in plain JAX (tails / tiny inputs)."""
    p = p.astype(jnp.float32)
    n = n.astype(jnp.float32)
    d = p - n
    lse = lambda x: jnp.log(1.0 + jnp.exp(-jnp.abs(x)))
    s = [jnp.float32(0.0)] * _NSLOT
    s[_MAR] = jnp.sum(d)
    s[_ACC] = jnp.sum((d > 0.0).astype(jnp.float32))
    if use_pos_neg:
        s[_POS] = jnp.sum(jnp.maximum(-p, 0.0) + lse(p))
        s[_NEG] = jnp.sum(jnp.maximum(n, 0.0) + lse(n))
        s[_SUMP] = jnp.sum(p)
    if contrastive:
        s[_CON] = jnp.sum(jnp.maximum(-d, 0.0) + lse(d))
    if use_sq:
        s[_SQ] = jnp.sum(p * p + n * n) if centered else jnp.sum((p + n) ** 2)
    return jnp.stack(s)


def _finalize(sums, total, *, ls, contrastive, penalty, use_pos_neg):
    inv = 1.0 / float(total)
    sum_d = sums[_MAR]
    if use_pos_neg:
        pos_sum = sums[_POS]
        neg_sum = sums[_NEG]
        if ls != 0.0:
            sum_p = sums[_SUMP]
            pos_sum = pos_sum + ls * sum_p                 # + ls * sum(p)
            neg_sum = neg_sum - ls * (sum_p - sum_d)       # - ls * sum(n)
        pos_loss = pos_sum * inv
        neg_loss = neg_sum * inv
    else:
        pos_loss = jnp.float32(0.0)
        neg_loss = jnp.float32(0.0)
    pen = penalty * sums[_SQ] * inv if penalty != 0.0 else 0.0
    if contrastive:
        con_sum = sums[_CON]
        if ls != 0.0:
            con_sum = con_sum + ls * sum_d                 # + ls * sum(d)
        loss = con_sum * inv + pen
    else:
        loss = pos_loss + neg_loss + pen
    metrics = {
        "dph/chosen": pos_loss,
        "dph/rejected": neg_loss,
        "dph/accuracy": sums[_ACC] * inv,
        "dph/margin": sum_d * inv,
    }
    return loss, metrics


def dph_loss(pos_logits, neg_logits, *, label_smoothing=0.0, contrastive=False,
             penalty=0.0, centered=True, with_chosen_rejected=True,
             approx_transcendentals=False):
    """Returns (loss, metrics) matching DPHLoss.forward semantics."""
    assert pos_logits.shape == neg_logits.shape
    ls = float(label_smoothing)
    penalty = float(penalty)
    contrastive = bool(contrastive)
    centered = bool(centered)
    use_pos_neg = bool(with_chosen_rejected) or not contrastive
    use_sq = penalty != 0.0

    total = int(pos_logits.size)
    pos_flat = pos_logits.reshape(-1)
    neg_flat = neg_logits.reshape(-1)
    itemsize = jnp.dtype(pos_logits.dtype).itemsize

    plan = _plan(total, itemsize)
    sums = jnp.zeros((_NSLOT,), jnp.float32)
    main = 0

    if plan is not None:
        nc, inner_steps, tm, chunk, main_rows, vmem_limit = plan
        main = main_rows * _LANE
        # TODO(synk): for non-tile-divisible inputs the prefix slice below is still
        # one extra HBM pass over the main part (XLA cannot alias it into the
        # custom call); tile-divisible inputs are zero-copy reshapes.
        p2 = (pos_flat if main == total else pos_flat[:main]).reshape(main_rows, _LANE)
        n2 = (neg_flat if main == total else neg_flat[:main]).reshape(main_rows, _LANE)

        kernel = functools.partial(
            _dph_kernel, ls=ls, contrastive=contrastive, centered=centered,
            use_pos_neg=use_pos_neg, use_sq=use_sq, tm=tm, chunk=chunk,
            approx_lse=bool(approx_transcendentals))

        partials = pl.pallas_call(
            kernel,
            out_shape=jax.ShapeDtypeStruct((nc, _NSLOT, 8, _LANE), jnp.float32),
            grid_spec=pltpu.PrefetchScalarGridSpec(
                num_scalar_prefetch=0,
                grid=(nc, inner_steps),
                in_specs=[
                    pl.BlockSpec((tm, _LANE), lambda c, i: (c * inner_steps + i, 0)),
                    pl.BlockSpec((tm, _LANE), lambda c, i: (c * inner_steps + i, 0)),
                ],
                out_specs=pl.BlockSpec((1, _NSLOT, 8, _LANE),
                                       lambda c, i: (c, 0, 0, 0)),
            ),
            compiler_params=pltpu.CompilerParams(
                dimension_semantics=("parallel", "arbitrary"),
                vmem_limit_bytes=vmem_limit,
            ),
        )(p2, n2)
        sums = sums + jnp.sum(partials, axis=(0, 2, 3))   # tiny finalization reduce

    if main < total:
        # <1-tile tail (or tiny input): a few lines of plain JAX, fused by XLA
        sums = sums + _raw_sums_jax(pos_flat[main:], neg_flat[main:],
                                    contrastive=contrastive, centered=centered,
                                    use_pos_neg=use_pos_neg, use_sq=use_sq)

    return _finalize(sums, total, ls=ls, contrastive=contrastive,
                     penalty=penalty, use_pos_neg=use_pos_neg)


def _reference(pos, neg, *, label_smoothing, contrastive, penalty, centered):
    """Pure-JAX reference mirroring the PyTorch forward (sanity check)."""
    p = pos.astype(jnp.float32)
    n = neg.astype(jnp.float32)
    pen = penalty * (jnp.mean(p ** 2 + n ** 2) if centered else jnp.mean((p + n) ** 2))
    d = p - n
    logsig = jax.nn.log_sigmoid
    con = jnp.mean(-logsig(d) * (1.0 - label_smoothing) - logsig(-d) * label_smoothing)
    bce = lambda x, t: jnp.mean(jnp.maximum(x, 0.0) - x * t
                                + jnp.log1p(jnp.exp(-jnp.abs(x))))
    pos_loss = bce(p, 1.0 - label_smoothing)
    neg_loss = bce(n, label_smoothing)
    loss = (con if contrastive else pos_loss + neg_loss) + pen
    return loss, {
        "dph/chosen": pos_loss,
        "dph/rejected": neg_loss,
        "dph/accuracy": jnp.mean((p > n).astype(jnp.float32)),
        "dph/margin": jnp.mean(d),
    }


def _check(pos, neg, cfg):
    loss, metrics = dph_loss(pos, neg, **cfg)
    loss = jax.block_until_ready(loss)
    for v in metrics.values():
        jax.block_until_ready(v)
    ref_loss, ref_metrics = _reference(pos, neg, **cfg)
    assert jnp.allclose(loss, ref_loss, atol=2e-5, rtol=2e-5), (loss, ref_loss)
    for k in metrics:
        assert jnp.allclose(metrics[k], ref_metrics[k], atol=2e-5, rtol=2e-5), (
            k, metrics[k], ref_metrics[k])


if __name__ == "__main__":
    key = jax.random.PRNGKey(0)
    k1, k2, k3, k4, k5, k6, k7, k8 = jax.random.split(key, 8)

    # 1) tile-divisible f32, separable (non-contrastive) loss + centered L2 penalty
    _check(jax.random.normal(k1, (16, 128), jnp.float32) * 1.5,
           jax.random.normal(k2, (16, 128), jnp.float32) * 1.5,
           dict(label_smoothing=0.1, contrastive=False, penalty=0.01, centered=True))

    # 2) ragged f32 (kernel prefix + plain-JAX tail), contrastive, non-centered penalty
    _check(jax.random.normal(k3, (37, 100), jnp.float32) * 2.0,
           jax.random.normal(k4, (37, 100), jnp.float32) * 2.0,
           dict(label_smoothing=0.05, contrastive=True, penalty=0.02, centered=False))

    # 3) bf16 inputs (in-kernel upcast, 16-row packing), contrastive, no smoothing
    _check(jax.random.normal(k5, (40, 128), jnp.bfloat16) * 2.0,
           jax.random.normal(k6, (40, 128), jnp.bfloat16) * 2.0,
           dict(label_smoothing=0.0, contrastive=True, penalty=0.0, centered=True))

    # 4) larger f32 input exercising the chunked in-kernel fori_loop pipeline
    _check(jax.random.normal(k7, (768, 256), jnp.float32),
           jax.random.normal(k8, (768, 256), jnp.float32),
           dict(label_smoothing=0.1, contrastive=False, penalty=0.0, centered=True))

    print("KERNEL_OK")
</pallas_src>

<mosaic_0001>
module attributes {stable_mosaic.version = 11 : i64} {
  func.func @_dph_kernel(%arg0: i32, %arg1: i32, %arg2: memref<16x128xf32, #tpu.memory_space<vmem>>, %arg3: memref<16x128xf32, #tpu.memory_space<vmem>>, %arg4: memref<1x7x8x128xf32, #tpu.memory_space<vmem>>) attributes {dimension_semantics = [#tpu.dimension_semantics<parallel>, #tpu.dimension_semantics<arbitrary>], iteration_bounds = array<i64: 1, 1>, scalar_prefetch = 0 : i64, scratch_operands = 0 : i64, tpu.core_type = #tpu.core_type<tc>, window_params = [{transform_indices = @transform_0, window_bounds = array<i64: 16, 128>}, {transform_indices = @transform_1, window_bounds = array<i64: 16, 128>}, {transform_indices = @transform_2, window_bounds = array<i64: 1, 7, 8, 128>}]} {
    %c0_i32 = arith.constant 0 : i32
    %0 = arith.cmpi eq, %arg1, %c0_i32 : i32
    %1 = arith.extui %0 : i1 to i32
    %c0_i32_0 = arith.constant 0 : i32
    %2 = arith.cmpi ne, %1, %c0_i32_0 : i32
    scf.if %2 {
      %cst_66 = arith.constant 0.000000e+00 : f32
      %94 = vector.broadcast %cst_66 : f32 to vector<1x7x8x128xf32>
      %c0_67 = arith.constant 0 : index
      %c0_68 = arith.constant 0 : index
      %c0_69 = arith.constant 0 : index
      %c0_70 = arith.constant 0 : index
      %95 = vector.load %arg4[%c0_67, %c0_68, %c0_69, %c0_70] : memref<1x7x8x128xf32, #tpu.memory_space<vmem>>, vector<1x7x8x128xf32>
      tpu.vector_store %arg4[%c0_67, %c0_68, %c0_69, %c0_70], %94 {strides = array<i32>} : memref<1x7x8x128xf32, #tpu.memory_space<vmem>>, vector<1x7x8x128xf32>,
    } else {
    }
    %cst = arith.constant 0.000000e+00 : f32
    %3 = vector.broadcast %cst : f32 to vector<8x128xf32>
    %cst_1 = arith.constant 0.000000e+00 : f32
    %4 = vector.broadcast %cst_1 : f32 to vector<8x128xf32>
    %cst_2 = arith.constant 0.000000e+00 : f32
    %5 = vector.broadcast %cst_2 : f32 to vector<8x128xf32>
    %cst_3 = arith.constant 0.000000e+00 : f32
    %6 = vector.broadcast %cst_3 : f32 to vector<8x128xf32>
    %cst_4 = arith.constant 0.000000e+00 : f32
    %7 = vector.broadcast %cst_4 : f32 to vector<8x128xf32>
    %cst_5 = arith.constant 0.000000e+00 : f32
    %8 = vector.broadcast %cst_5 : f32 to vector<8x128xf32>
    %c0 = arith.constant 0 : index
    %c0_6 = arith.constant 0 : index
    %9 = vector.load %arg2[%c0, %c0_6] : memref<16x128xf32, #tpu.memory_space<vmem>>, vector<16x128xf32>
    %c0_7 = arith.constant 0 : index
    %c0_8 = arith.constant 0 : index
    %10 = vector.load %arg3[%c0_7, %c0_8] : memref<16x128xf32, #tpu.memory_space<vmem>>, vector<16x128xf32>
    %11 = arith.subf %9, %10 : vector<16x128xf32>
    %12 = vector.shape_cast %11 : vector<16x128xf32> to vector<2x8x128xf32>
    %cst_9 = arith.constant dense<0.000000e+00> : vector<8x128xf32>
    %13 = vector.multi_reduction <add>, %12, %cst_9 [0] : vector<2x8x128xf32> to vector<8x128xf32>
    %14 = arith.addf %7, %13 : vector<8x128xf32>
    %cst_10 = arith.constant 0.000000e+00 : f32
    %15 = vector.broadcast %cst_10 : f32 to vector<16x128xf32>
    %16 = arith.cmpf ogt, %11, %15 : vector<16x128xf32>
    %cst_11 = arith.constant 1.000000e+00 : f32
    %cst_12 = arith.constant 0.000000e+00 : f32
    %17 = vector.broadcast %cst_11 : f32 to vector<16x128xf32>
    %18 = vector.broadcast %cst_12 : f32 to vector<16x128xf32>
    %19 = arith.select %16, %17, %18 : vector<16x128xi1>, vector<16x128xf32>
    %20 = vector.shape_cast %19 : vector<16x128xf32> to vector<2x8x128xf32>
    %cst_13 = arith.constant dense<0.000000e+00> : vector<8x128xf32>
    %21 = vector.multi_reduction <add>, %20, %cst_13 [0] : vector<2x8x128xf32> to vector<8x128xf32>
    %22 = arith.addf %6, %21 : vector<8x128xf32>
    %cst_14 = arith.constant 0.000000e+00 : f32
    %23 = vector.broadcast %cst_14 : f32 to vector<16x128xf32>
    %24 = arith.subf %23, %9 : vector<16x128xf32>
    %cst_15 = arith.constant 0.000000e+00 : f32
    %25 = vector.broadcast %cst_15 : f32 to vector<16x128xf32>
    %26 = arith.maximumf %24, %25 : vector<16x128xf32>
    %27 = arith.minimumf %9, %24 : vector<16x128xf32>
    %28 = math.exp %27 : vector<16x128xf32>
    %cst_16 = arith.constant 1.000000e+00 : f32
    %29 = vector.broadcast %cst_16 : f32 to vector<16x128xf32>
    %30 = arith.addf %29, %28 : vector<16x128xf32>
    %31 = math.log %30 : vector<16x128xf32>
    %32 = arith.addf %26, %31 : vector<16x128xf32>
    %33 = vector.shape_cast %32 : vector<16x128xf32> to vector<2x8x128xf32>
    %cst_17 = arith.constant dense<0.000000e+00> : vector<8x128xf32>
    %34 = vector.multi_reduction <add>, %33, %cst_17 [0] : vector<2x8x128xf32> to vector<8x128xf32>
    %35 = arith.addf %3, %34 : vector<8x128xf32>
    %cst_18 = arith.constant 0.000000e+00 : f32
    %36 = vector.broadcast %cst_18 : f32 to vector<16x128xf32>
    %37 = arith.subf %36, %10 : vector<16x128xf32>
    %cst_19 = arith.constant 0.000000e+00 : f32
    %38 = vector.broadcast %cst_19 : f32 to vector<16x128xf32>
    %39 = arith.maximumf %10, %38 : vector<16x128xf32>
    %40 = arith.minimumf %10, %37 : vector<16x128xf32>
    %41 = math.exp %40 : vector<16x128xf32>
    %cst_20 = arith.constant 1.000000e+00 : f32
    %42 = vector.broadcast %cst_20 : f32 to vector<16x128xf32>
    %43 = arith.addf %42, %41 : vector<16x128xf32>
    %44 = math.log %43 : vector<16x128xf32>
    %45 = arith.addf %39, %44 : vector<16x128xf32>
    %46 = vector.shape_cast %45 : vector<16x128xf32> to vector<2x8x128xf32>
    %cst_21 = arith.constant dense<0.000000e+00> : vector<8x128xf32>
    %47 = vector.multi_reduction <add>, %46, %cst_21 [0] : vector<2x8x128xf32> to vector<8x128xf32>
    %48 = arith.addf %4, %47 : vector<8x128xf32>
    %49 = vector.shape_cast %9 : vector<16x128xf32> to vector<2x8x128xf32>
    %cst_22 = arith.constant dense<0.000000e+00> : vector<8x128xf32>
    %50 = vector.multi_reduction <add>, %49, %cst_22 [0] : vector<2x8x128xf32> to vector<8x128xf32>
    %51 = arith.addf %8, %50 : vector<8x128xf32>
    %52 = arith.mulf %9, %9 : vector<16x128xf32>
    %53 = arith.mulf %10, %10 : vector<16x128xf32>
    %54 = arith.addf %52, %53 : vector<16x128xf32>
    %55 = vector.shape_cast %54 : vector<16x128xf32> to vector<2x8x128xf32>
    %cst_23 = arith.constant dense<0.000000e+00> : vector<8x128xf32>
    %56 = vector.multi_reduction <add>, %55, %cst_23 [0] : vector<2x8x128xf32> to vector<8x128xf32>
    %57 = arith.addf %5, %56 : vector<8x128xf32>
    %c0_24 = arith.constant 0 : index
    %c1 = arith.constant 1 : index
    %c0_25 = arith.constant 0 : index
    %c0_26 = arith.constant 0 : index
    %58 = vector.load %arg4[%c0_24, %c1, %c0_25, %c0_26] : memref<1x7x8x128xf32, #tpu.memory_space<vmem>>, vector<1x1x8x128xf32>
    %59 = vector.shape_cast %58 : vector<1x1x8x128xf32> to vector<8x128xf32>
    %60 = arith.addf %59, %35 : vector<8x128xf32>
    %c0_27 = arith.constant 0 : index
    %c1_28 = arith.constant 1 : index
    %c0_29 = arith.constant 0 : index
    %c0_30 = arith.constant 0 : index
    %61 = vector.load %arg4[%c0_27, %c1_28, %c0_29, %c0_30] : memref<1x7x8x128xf32, #tpu.memory_space<vmem>>, vector<1x1x8x128xf32>
    %62 = vector.shape_cast %61 : vector<1x1x8x128xf32> to vector<8x128xf32>
    %63 = vector.shape_cast %60 : vector<8x128xf32> to vector<1x1x8x128xf32>
    tpu.vector_store %arg4[%c0_27, %c1_28, %c0_29, %c0_30], %63 {strides = array<i32>} : memref<1x7x8x128xf32, #tpu.memory_space<vmem>>, vector<1x1x8x128xf32>,
    %c0_31 = arith.constant 0 : index
    %c2 = arith.constant 2 : index
    %c0_32 = arith.constant 0 : index
    %c0_33 = arith.constant 0 : index
    %64 = vector.load %arg4[%c0_31, %c2, %c0_32, %c0_33] : memref<1x7x8x128xf32, #tpu.memory_space<vmem>>, vector<1x1x8x128xf32>
    %65 = vector.shape_cast %64 : vector<1x1x8x128xf32> to vector<8x128xf32>
    %66 = arith.addf %65, %48 : vector<8x128xf32>
    %c0_34 = arith.constant 0 : index
    %c2_35 = arith.constant 2 : index
    %c0_36 = arith.constant 0 : index
    %c0_37 = arith.constant 0 : index
    %67 = vector.load %arg4[%c0_34, %c2_35, %c0_36, %c0_37] : memref<1x7x8x128xf32, #tpu.memory_space<vmem>>, vector<1x1x8x128xf32>
    %68 = vector.shape_cast %67 : vector<1x1x8x128xf32> to vector<8x128xf32>
    %69 = vector.shape_cast %66 : vector<8x128xf32> to vector<1x1x8x128xf32>
    tpu.vector_store %arg4[%c0_34, %c2_35, %c0_36, %c0_37], %69 {strides = array<i32>} : memref<1x7x8x128xf32, #tpu.memory_space<vmem>>, vector<1x1x8x128xf32>,
    %c0_38 = arith.constant 0 : index
    %c3 = arith.constant 3 : index
    %c0_39 = arith.constant 0 : index
    %c0_40 = arith.constant 0 : index
    %70 = vector.load %arg4[%c0_38, %c3, %c0_39, %c0_40] : memref<1x7x8x128xf32, #tpu.memory_space<vmem>>, vector<1x1x8x128xf32>
    %71 = vector.shape_cast %70 : vector<1x1x8x128xf32> to vector<8x128xf32>
    %72 = arith.addf %71, %57 : vector<8x128xf32>
    %c0_41 = arith.constant 0 : index
    %c3_42 = arith.constant 3 : index
    %c0_43 = arith.constant 0 : index
    %c0_44 = arith.constant 0 : index
    %73 = vector.load %arg4[%c0_41, %c3_42, %c0_43, %c0_44] : memref<1x7x8x128xf32, #tpu.memory_space<vmem>>, vector<1x1x8x128xf32>
    %74 = vector.shape_cast %73 : vector<1x1x8x128xf32> to vector<8x128xf32>
    %75 = vector.shape_cast %72 : vector<8x128xf32> to vector<1x1x8x128xf32>
    tpu.vector_store %arg4[%c0_41, %c3_42, %c0_43, %c0_44], %75 {strides = array<i32>} : memref<1x7x8x128xf32, #tpu.memory_space<vmem>>, vector<1x1x8x128xf32>,
    %c0_45 = arith.constant 0 : index
    %c4 = arith.constant 4 : index
    %c0_46 = arith.constant 0 : index
    %c0_47 = arith.constant 0 : index
    %76 = vector.load %arg4[%c0_45, %c4, %c0_46, %c0_47] : memref<1x7x8x128xf32, #tpu.memory_space<vmem>>, vector<1x1x8x128xf32>
    %77 = vector.shape_cast %76 : vector<1x1x8x128xf32> to vector<8x128xf32>
    %78 = arith.addf %77, %22 : vector<8x128xf32>
    %c0_48 = arith.constant 0 : index
    %c4_49 = arith.constant 4 : index
    %c0_50 = arith.constant 0 : index
    %c0_51 = arith.constant 0 : index
    %79 = vector.load %arg4[%c0_48, %c4_49, %c0_50, %c0_51] : memref<1x7x8x128xf32, #tpu.memory_space<vmem>>, vector<1x1x8x128xf32>
    %80 = vector.shape_cast %79 : vector<1x1x8x128xf32> to vector<8x128xf32>
    %81 = vector.shape_cast %78 : vector<8x128xf32> to vector<1x1x8x128xf32>
    tpu.vector_store %arg4[%c0_48, %c4_49, %c0_50, %c0_51], %81 {strides = array<i32>} : memref<1x7x8x128xf32, #tpu.memory_space<vmem>>, vector<1x1x8x128xf32>,
    %c0_52 = arith.constant 0 : index
    %c5 = arith.constant 5 : index
    %c0_53 = arith.constant 0 : index
    %c0_54 = arith.constant 0 : index
    %82 = vector.load %arg4[%c0_52, %c5, %c0_53, %c0_54] : memref<1x7x8x128xf32, #tpu.memory_space<vmem>>, vector<1x1x8x128xf32>
    %83 = vector.shape_cast %82 : vector<1x1x8x128xf32> to vector<8x128xf32>
    %84 = arith.addf %83, %14 : vector<8x128xf32>
    %c0_55 = arith.constant 0 : index
    %c5_56 = arith.constant 5 : index
    %c0_57 = arith.constant 0 : index
    %c0_58 = arith.constant 0 : index
    %85 = vector.load %arg4[%c0_55, %c5_56, %c0_57, %c0_58] : memref<1x7x8x128xf32, #tpu.memory_space<vmem>>, vector<1x1x8x128xf32>
    %86 = vector.shape_cast %85 : vector<1x1x8x128xf32> to vector<8x128xf32>
    %87 = vector.shape_cast %84 : vector<8x128xf32> to vector<1x1x8x128xf32>
    tpu.vector_store %arg4[%c0_55, %c5_56, %c0_57, %c0_58], %87 {strides = array<i32>} : memref<1x7x8x128xf32, #tpu.memory_space<vmem>>, vector<1x1x8x128xf32>,
    %c0_59 = arith.constant 0 : index
    %c6 = arith.constant 6 : index
    %c0_60 = arith.constant 0 : index
    %c0_61 = arith.constant 0 : index
    %88 = vector.load %arg4[%c0_59, %c6, %c0_60, %c0_61] : memref<1x7x8x128xf32, #tpu.memory_space<vmem>>, vector<1x1x8x128xf32>
    %89 = vector.shape_cast %88 : vector<1x1x8x128xf32> to vector<8x128xf32>
    %90 = arith.addf %89, %51 : vector<8x128xf32>
    %c0_62 = arith.constant 0 : index
    %c6_63 = arith.constant 6 : index
    %c0_64 = arith.constant 0 : index
    %c0_65 = arith.constant 0 : index
    %91 = vector.load %arg4[%c0_62, %c6_63, %c0_64, %c0_65] : memref<1x7x8x128xf32, #tpu.memory_space<vmem>>, vector<1x1x8x128xf32>
    %92 = vector.shape_cast %91 : vector<1x1x8x128xf32> to vector<8x128xf32>
    %93 = vector.shape_cast %90 : vector<8x128xf32> to vector<1x1x8x128xf32>
    tpu.vector_store %arg4[%c0_62, %c6_63, %c0_64, %c0_65], %93 {strides = array<i32>} : memref<1x7x8x128xf32, #tpu.memory_space<vmem>>, vector<1x1x8x128xf32>,
    return
  }
  func.func @transform_0(%arg0: i32, %arg1: i32) -> (i32, i32) {
    %c1_i32 = arith.constant 1 : i32
    %0 = arith.muli %arg0, %c1_i32 : i32
    %1 = arith.addi %0, %arg1 : i32
    %c0_i32 = arith.constant 0 : i32
    %c0_i32_0 = arith.constant 0 : i32
    return %1, %c0_i32 : i32, i32
  }
  func.func @transform_1(%arg0: i32, %arg1: i32) -> (i32, i32) {
    %c1_i32 = arith.constant 1 : i32
    %0 = arith.muli %arg0, %c1_i32 : i32
    %1 = arith.addi %0, %arg1 : i32
    %c0_i32 = arith.constant 0 : i32
    %c0_i32_0 = arith.constant 0 : i32
    return %1, %c0_i32 : i32, i32
  }
  func.func @transform_2(%arg0: i32, %arg1: i32) -> (i32, i32, i32, i32) {
    %c0_i32 = arith.constant 0 : i32
    %c0_i32_0 = arith.constant 0 : i32
    %c0_i32_1 = arith.constant 0 : i32
    %c0_i32_2 = arith.constant 0 : i32
    return %arg0, %c0_i32, %c0_i32_0, %c0_i32_1 : i32, i32, i32, i32
  }
}

</mosaic_0001>

<llo_original>
// kernel: tpu_custom_call.1
$region0: #{tpu_custom_call.1}
  #allocation0 [shape = 'u32[]', space=smem, size = 0x4, offset = 0x4, fixed_abs, tag = 'smem constant byte address 0x4 - core index']
  #allocation1 [shape = 'u32[144,128]{1,0:T(1,128)}', space=vmem, size = 0x12000, scoped, tag = 'internal scratch']
  %s0 = inlined_call_operand.hbm [shape: f32[16,128], index: 0, kind: input, shape index: {}]
  %s1 = inlined_call_operand.hbm [shape: f32[16,128], index: 1, kind: input, shape index: {}]
  %s2 = inlined_call_operand.hbm [shape: f32[1,7,8,128], index: 2, kind: output, shape index: {}]
  %s3 = sld [smem:[#allocation0]]
  $region30: #{tpu_custom_call.1} parent=0
    _
  %s5 = ssub.s32 1, %s3
  %s6 = scalar_select 0, %s5, %s3
  $region1: #{tpu_custom_call.1} parent=0
    #allocation2 [shape = 'u8[8192]{0}', space=vmem, size = 0x2000, scoped, tag = 'input window, operand 0, single buffered']
    #allocation3 [shape = 's32[1]{0}', space=sflag, size = 0x4, scoped, tag = 'scoped memory for tpu_custom_call.1']
    #allocation4 [shape = 's32[1]{0}', space=sflag, size = 0x4, scoped, tag = 'scoped memory for tpu_custom_call.1']
    #allocation5 [shape = 'u8[8192]{0}', space=vmem, size = 0x2000, scoped, tag = 'input window, operand 1, single buffered']
    #allocation6 [shape = 's32[1]{0}', space=sflag, size = 0x4, scoped, tag = 'scoped memory for tpu_custom_call.1']
    #allocation7 [shape = 'u8[28672]{0}', space=vmem, size = 0x7000, scoped, tag = 'output window, operand 0, single buffered']
    %7 = vsyncpa [#allocation3], 0
    %8 = vsyncpa [#allocation6], 0
    %9 = vsyncpa [#allocation4], 0
    // Predicated region
    $region2: #{tpu_custom_call.1} parent=1 // pred_check
      _
    $region3: #{tpu_custom_call.1} parent=1 // pred_check_branch
      %11 = sbr.rel (0) target = $region5
    $region4: #{tpu_custom_call.1} parent=1 // pred_region
      %s12 = sadd.s32 0, 0
      %s13 = smul.u32 2, %s12
      %s15 = ssub.s32 256, 256
      %16 = vsyncadd [#allocation3], %s15
      %s17 = smul.addr %s13, 128
      %s18 = scalar_lea.hbm %s0, %s17
      %s19 = sshll.u32 [#allocation2], 4
      %s20 = int_to_ptr.vmem [resolvable:$true] %s19
      %25 = dma.hbm_to_vmem [thread:$0]  %s18, 256, %s20, [#allocation3], 128, 128, 8
    $region5: #{tpu_custom_call.1} parent=1 // pred_fallthru
      _
    // Predicated region
    $region6: #{tpu_custom_call.1} parent=1 // pred_check
      _
    $region7: #{tpu_custom_call.1} parent=1 // pred_check_branch
      %27 = sbr.rel (0) target = $region9
    $region8: #{tpu_custom_call.1} parent=1 // pred_region
      %s28 = sadd.s32 0, 0
      %s29 = smul.u32 2, %s28
      %s31 = ssub.s32 256, 256
      %32 = vsyncadd [#allocation6], %s31
      %s33 = smul.addr %s29, 128
      %s34 = scalar_lea.hbm %s1, %s33
      %s35 = sshll.u32 [#allocation5], 4
      %s36 = int_to_ptr.vmem [resolvable:$true] %s35
      %41 = dma.hbm_to_vmem [thread:$0]  %s34, 256, %s36, [#allocation6], 128, 128, 8
    $region9: #{tpu_custom_call.1} parent=1 // pred_fallthru
      _
    // Predicated region
    $region10: #{tpu_custom_call.1} parent=1 // pred_check
      _
    $region11: #{tpu_custom_call.1} parent=1 // pred_check_branch
      %43 = sbr.rel (0) target = $region13
    $region12: #{tpu_custom_call.1} parent=1 // pred_region
      %44 = dma.done [#allocation3], 256
    $region13: #{tpu_custom_call.1} parent=1 // pred_fallthru
      _
    // Predicated region
    $region14: #{tpu_custom_call.1} parent=1 // pred_check
      _
    $region15: #{tpu_custom_call.1} parent=1 // pred_check_branch
      %46 = sbr.rel (0) target = $region17
    $region16: #{tpu_custom_call.1} parent=1 // pred_region
      %47 = dma.done [#allocation6], 256
    $region17: #{tpu_custom_call.1} parent=1 // pred_fallthru
      _
    %s48 = sadd.s32 0, 0
    %s49 = smul.u32 2, %s48
    %s50 = sadd.s32 0, 0
    %s51 = smul.u32 2, %s50
    %p52 = scmp.eq.s32.totalorder 0, 0
    // Predicated region
    $region18: #{tpu_custom_call.1} parent=1 // pred_check
      %p53 = pneg %p52
    $region19: #{tpu_custom_call.1} parent=1 // pred_check_branch
      %55 = sbr.rel (%p53) target = $region21
    $region20: #{tpu_custom_call.1} parent=1 // pred_region
      %56 = vst [vmem:[#allocation7] sm:$0xff] 0.0
      %57 = vst [vmem:[#allocation7 + $0x8] sm:$0xff] 0.0
      %58 = vst [vmem:[#allocation7 + $0x10] sm:$0xff] 0.0
      %59 = vst [vmem:[#allocation7 + $0x18] sm:$0xff] 0.0
      %60 = vst [vmem:[#allocation7 + $0x20] sm:$0xff] 0.0
      %61 = vst [vmem:[#allocation7 + $0x28] sm:$0xff] 0.0
      %62 = vst [vmem:[#allocation7 + $0x30] sm:$0xff] 0.0
    $region21: #{tpu_custom_call.1} parent=1 // pred_fallthru
      _
    %v63 = vld [vmem:[#allocation2] sm:$0xff]
    %v64 = vld [vmem:[#allocation2 + $0x8] sm:$0xff]
    %v65 = vld [vmem:[#allocation5] sm:$0xff]
    %v66 = vld [vmem:[#allocation5 + $0x8] sm:$0xff]
    %v67 = vsub.f32 %v63, %v65
    %v68 = vsub.f32 %v64, %v66
    %v69 = vadd.f32 %v67, %v68
    %v70 = vadd.f32 %v69, 0.0
    %vm71 = vcmp.gt.f32.partialorder %v67, 0.0
    %vm72 = vcmp.gt.f32.partialorder %v68, 0.0
    %v73 = vsel %vm71, 1.0, 0.0
    %v74 = vsel %vm72, 1.0, 0.0
    %v75 = vadd.f32 %v73, %v74
    %v76 = vadd.f32 %v75, 0.0
    %v77 = vsub.f32 0.0, %v63
    %v78 = vsub.f32 0.0, %v64
    %v79 = vmax.f32 %v77, 0.0
    %v80 = vmax.f32 %v78, 0.0
    %v81 = vmin.f32 %v63, %v77
    %v82 = vmin.f32 %v64, %v78
    %v83 = vmul.f32 %v81, 1.442695
    %v84 = vpow.pop %v83
    %v85 = vmul.f32 %v82, 1.442695
    %v86 = vpow.pop %v85
    %v87 = vadd.f32 %v84, 1.0
    %v88 = vadd.f32 %v86, 1.0
    %v89 = vlog2.pop %v87
    %v90 = vmul.f32 %v89, 0.6931472
    %v91 = vlog2.pop %v88
    %v92 = vmul.f32 %v91, 0.6931472
    %v93 = vadd.f32 %v79, %v90
    %v94 = vadd.f32 %v80, %v92
    %v95 = vadd.f32 %v93, %v94
    %v96 = vadd.f32 %v95, 0.0
    %v97 = vsub.f32 0.0, %v65
    %v98 = vsub.f32 0.0, %v66
    %v99 = vmax.f32 %v65, 0.0
    %v100 = vmax.f32 %v66, 0.0
    %v101 = vmin.f32 %v65, %v97
    %v102 = vmin.f32 %v66, %v98
    %v103 = vmul.f32 %v101, 1.442695
    %v104 = vpow.pop %v103
    %v105 = vmul.f32 %v102, 1.442695
    %v106 = vpow.pop %v105
    %v107 = vadd.f32 %v104, 1.0
    %v108 = vadd.f32 %v106, 1.0
    %v109 = vlog2.pop %v107
    %v110 = vmul.f32 %v109, 0.6931472
    %v111 = vlog2.pop %v108
    %v112 = vmul.f32 %v111, 0.6931472
    %v113 = vadd.f32 %v99, %v110
    %v114 = vadd.f32 %v100, %v112
    %v115 = vadd.f32 %v113, %v114
    %v116 = vadd.f32 %v115, 0.0
    %v117 = vadd.f32 %v63, %v64
    %v118 = vadd.f32 %v117, 0.0
    %v119 = vmul.f32 %v63, %v63
    %v120 = vmul.f32 %v64, %v64
    %v121 = vmul.f32 %v65, %v65
    %v122 = vmul.f32 %v66, %v66
    %v123 = vadd.f32 %v119, %v121
    %v124 = vadd.f32 %v120, %v122
    %v125 = vadd.f32 %v123, %v124
    %v126 = vadd.f32 %v125, 0.0
    %s127 = scalar_lea.vmem [#allocation7], 8
    %v128 = vld [vmem:[%s127] sm:$0xff]
    %v129 = vadd.f32 %v128, %v96
    %130 = vst [vmem:[%s127] sm:$0xff] %v129
    %s131 = scalar_lea.vmem [#allocation7], 16
    %v132 = vld [vmem:[%s131] sm:$0xff]
    %v133 = vadd.f32 %v132, %v116
    %134 = vst [vmem:[%s131] sm:$0xff] %v133
    %s135 = scalar_lea.vmem [#allocation7], 24
    %v136 = vld [vmem:[%s135] sm:$0xff]
    %v137 = vadd.f32 %v136, %v126
    %138 = vst [vmem:[%s135] sm:$0xff] %v137
    %s139 = scalar_lea.vmem [#allocation7], 32
    %v140 = vld [vmem:[%s139] sm:$0xff]
    %v141 = vadd.f32 %v140, %v76
    %142 = vst [vmem:[%s139] sm:$0xff] %v141
    %s143 = scalar_lea.vmem [#allocation7], 40
    %v144 = vld [vmem:[%s143] sm:$0xff]
    %v145 = vadd.f32 %v144, %v70
    %146 = vst [vmem:[%s143] sm:$0xff] %v145
    %s147 = scalar_lea.vmem [#allocation7], 48
    %v148 = vld [vmem:[%s147] sm:$0xff]
    %v149 = vadd.f32 %v148, %v118
    %150 = vst [vmem:[%s147] sm:$0xff] %v149
    // Predicated region
    $region22: #{tpu_custom_call.1} parent=1 // pred_check
      _
    $region23: #{tpu_custom_call.1} parent=1 // pred_check_branch
      %152 = sbr.rel (0) target = $region25
    $region24: #{tpu_custom_call.1} parent=1 // pred_region
      %s154 = ssub.s32 896, 896
      %155 = vsyncadd [#allocation4], %s154
      %s156 = sshll.u32 [#allocation7], 4
      %s157 = int_to_ptr.vmem [resolvable:$true] %s156
      %162 = dma.vmem_to_hbm [thread:$0]  %s157, 896, %s2, [#allocation4], 128, 128, 8
    $region25: #{tpu_custom_call.1} parent=1 // pred_fallthru
      _
    // Predicated region
    $region26: #{tpu_custom_call.1} parent=1 // pred_check
      _
    $region27: #{tpu_custom_call.1} parent=1 // pred_check_branch
      %164 = sbr.rel (0) target = $region29
    $region28: #{tpu_custom_call.1} parent=1 // pred_region
      %165 = dma.done [#allocation4], 896
    $region29: #{tpu_custom_call.1} parent=1 // pred_fallthru
      _
    %166 = vsyncpa [#allocation3], 1
    %167 = vsyncpa [#allocation6], 1
    %168 = vsyncpa [#allocation4], 1

</llo_original>
